<compile_context>
chip_gen: v6e
topology: v6e:2x2x1
jax: 0.10.0
libtpu: 0.0.40
codegen_flags: <defaults>
</compile_context>

<pallas_src>
import functools

import jax
import jax.numpy as jnp
from jax import lax
from jax.experimental import pallas as pl
from jax.experimental.pallas import tpu as pltpu


_GT_SENTINEL = 1.0e8   # coordinate sentinel for invalid GT slots (torch uses 1e8 too)


def _classification_loss_kernel(pred_ref, gt_ref, cls_ref, gate_ref, logit_ref,
                                out_ref, *, lam):
    g = gt_ref.shape[2]        # (nb, 4, G)
    c = logit_ref.shape[2]     # (nb, A, C)

    pred = pred_ref[...]       # (nb, A, 4) f32
    gt_t = gt_ref[...]         # (nb, 4, G) f32, sentinel in invalid slots
    cls = cls_ref[...]         # (nb, 1, G) i32
    logits = logit_ref[...]    # (nb, A, C) f32, streamed unpadded (no cast)

    # L1 box distance: dist[b, a, g] = sum_d |pred[b, a, d] - gt[b, g, d]|
    # (invalid GT slots carry 1e8 coords => never selected when a real GT exists,
    #  matching the torch masked-distance semantics; GT coords must stay << 1e7)
    dist = jnp.abs(pred[:, :, 0:1] - gt_t[:, 0:1, :])
    for d in range(1, 4):                              # static, 4 coords
        dist = dist + jnp.abs(pred[:, :, d:d + 1] - gt_t[:, d:d + 1, :])

    # argmin over GT axis with first-minimum tie-break (matches torch.min);
    # broadcast-shape iota: no (nb, A, G) int32 temporary is materialized.
    gidx = lax.broadcasted_iota(jnp.int32, (1, 1, g), 2)
    min_d = jnp.min(dist, axis=-1, keepdims=True)                      # (nb, A, 1)
    closest = jnp.min(jnp.where(dist == min_d, gidx, g),
                      axis=-1, keepdims=True)                          # (nb, A, 1)

    # class of the closest GT box via one-hot select
    target = jnp.sum(jnp.where(gidx == closest, cls, 0),
                     axis=-1, keepdims=True)                           # (nb, A, 1) i32

    # cross entropy (reduction='none'): logsumexp(logits) - logits[target]
    m = jnp.max(logits, axis=-1, keepdims=True)
    lse = m + jnp.log(jnp.sum(jnp.exp(logits - m), axis=-1, keepdims=True))
    cidx = lax.broadcasted_iota(jnp.int32, (1, 1, c), 2)               # broadcast iota
    sel = jnp.sum(jnp.where(cidx == target, logits, 0.0),
                  axis=-1, keepdims=True)                              # (nb, A, 1)
    loss = (lse - sel) * jnp.float32(lam)                              # (nb, A, 1)

    # single vectorized epilogue: gate (nb,1,1) zeroes images with no GT boxes
    out_ref[...] = loss * gate_ref[...]


def _chip_info():
    """(num_tensorcores, vmem_limit_bytes) chosen per chip generation."""
    kind = ""
    try:
        kind = (jax.devices()[0].device_kind or "").lower()
    except Exception:
        pass
    if "v7" in kind or "7x" in kind:
        return 2, 48 * 1024 * 1024          # two TCs, 64 MiB physical VMEM
    if "v4" in kind or "v5" in kind or "v6" in kind:
        return 1, 64 * 1024 * 1024          # 128 MiB physical VMEM
    return 1, 32 * 1024 * 1024              # conservative default


def _pick_batch_block(n, a, g, c, vmem_budget, want_steps, prefer_even_steps):
    """Largest divisor of n that fits the VMEM budget and yields enough steps."""
    # per-image footprint: double-buffered f32 logits block + in-kernel f32
    # temporaries (exp, shifted logits, one-hot select) + the (A, G) distances
    per_img = 4 * a * c * 5 + 4 * a * g * 3 + 4 * a * 16
    cap = max(1, vmem_budget // max(per_img, 1))
    cands = [d for d in range(1, n + 1)
             if n % d == 0 and d <= cap and (n // d) >= want_steps]
    if not cands:
        return 1
    if prefer_even_steps:
        even = [d for d in cands if (n // d) % 2 == 0]
        if even:
            cands = even
    return max(cands)


def classification_loss(pred_boxes, gt_boxes, gt_mask, gt_classes,
                        class_logits, classification_lambda):
    """
    pred_boxes  : (N, A, 4) float  -- proposal boxes (xyxy)
    gt_boxes    : (N, G, 4) float  -- padded GT boxes
    gt_mask     : (N, G)    bool   -- valid GT slots
    gt_classes  : (N, G)    int    -- padded GT class ids
    class_logits: (N, A, C) float
    returns     : (N, A)    float32 per-proposal classification loss * lambda
    """
    N, A, _ = pred_boxes.shape
    G = gt_boxes.shape[1]
    C = class_logits.shape[-1]

    num_cores, vmem_limit = _chip_info()
    want_steps = 2 if (num_cores > 1 and N > 1) else 1
    nb = _pick_batch_block(N, A, G, C, int(vmem_limit * 0.7), want_steps,
                           prefer_even_steps=(num_cores > 1))
    n_blocks = N // nb

    # Small side inputs prepared in the wrapper (all tiny vs. the logits stream):
    # GT boxes coordinate-major with sentinel in invalid slots, classes as i32,
    # and a per-image 0/1 "has at least one GT" gate.
    gt_sent = jnp.where(gt_mask[..., None], gt_boxes.astype(jnp.float32),
                        _GT_SENTINEL)                                   # (N, G, 4)
    gt_t = jnp.transpose(gt_sent, (0, 2, 1))                            # (N, 4, G)
    cls_i = jnp.where(gt_mask, gt_classes.astype(jnp.int32), 0).reshape(N, 1, G)
    gate = gt_mask.any(axis=1).astype(jnp.float32).reshape(N, 1, 1)     # (N, 1, 1)
    pred_p = pred_boxes.astype(jnp.float32)
    logits_in = class_logits.astype(jnp.float32)   # no-op if already f32; no pad

    cost = pl.CostEstimate(
        flops=int(N * A * (12 * G + 8 * C)),
        transcendentals=int(N * A * (C + 1)),
        bytes_accessed=int(4 * (N * A * C + N * A * 4 + N * 4 * G + N * G
                                + N + N * A)),
    )

    kernel = functools.partial(_classification_loss_kernel,
                               lam=float(classification_lambda))
    out = pl.pallas_call(
        kernel,
        out_shape=jax.ShapeDtypeStruct((N, A, 1), jnp.float32),
        grid_spec=pltpu.PrefetchScalarGridSpec(
            num_scalar_prefetch=0,
            grid=(n_blocks,),
            in_specs=[
                pl.BlockSpec((nb, A, 4), lambda i: (i, 0, 0)),
                pl.BlockSpec((nb, 4, G), lambda i: (i, 0, 0)),
                pl.BlockSpec((nb, 1, G), lambda i: (i, 0, 0)),
                pl.BlockSpec((nb, 1, 1), lambda i: (i, 0, 0)),
                pl.BlockSpec((nb, A, C), lambda i: (i, 0, 0)),
            ],
            out_specs=pl.BlockSpec((nb, A, 1), lambda i: (i, 0, 0)),
        ),
        compiler_params=pltpu.CompilerParams(
            dimension_semantics=("parallel",),
            vmem_limit_bytes=int(vmem_limit)),
        cost_estimate=cost,
    )(pred_p, gt_t, cls_i, gate, logits_in)

    return out[:, :, 0]


def _reference(pred_boxes, gt_boxes, gt_mask, gt_classes, class_logits, lam):
    # pure-JAX reference mirroring the torch forward
    d = jnp.abs(pred_boxes[:, :, None, :] - gt_boxes[:, None, :, :]).sum(-1)
    d = jnp.where(gt_mask[:, None, :], d, 1e8)
    closest = jnp.argmin(d, axis=-1)                              # (N, A)
    target = jnp.take_along_axis(gt_classes, closest, axis=1)     # (N, A)
    logp = jax.nn.log_softmax(class_logits, axis=-1)
    loss = -jnp.take_along_axis(logp, target[..., None], axis=-1)[..., 0]
    not_empty = gt_mask.any(axis=1, keepdims=True)
    return jnp.where(not_empty, loss, 0.0) * lam


if __name__ == "__main__":
    key = jax.random.PRNGKey(0)
    k1, k2, k3, k4 = jax.random.split(key, 4)

    N, A, G, C = 2, 8, 4, 16          # batch, proposals, max gt boxes, classes
    classification_lambda = 2.0

    pred_boxes = jax.random.uniform(k1, (N, A, 4), jnp.float32) * 100.0
    gt_boxes = jax.random.uniform(k2, (N, G, 4), jnp.float32) * 100.0
    gt_classes = jax.random.randint(k3, (N, G), 0, C, jnp.int32)
    class_logits = jax.random.normal(k4, (N, A, C), jnp.float32)

    # image 0 has 3 valid GT boxes, image 1 has none (exercises the empty path)
    gt_mask = jnp.array([[True, True, True, False],
                         [False, False, False, False]])
    gt_boxes = jnp.where(gt_mask[..., None], gt_boxes, 0.0)       # zero padding
    gt_classes = jnp.where(gt_mask, gt_classes, 0)                # zero padding

    loss = classification_loss(pred_boxes, gt_boxes, gt_mask, gt_classes,
                               class_logits, classification_lambda)
    loss = jax.block_until_ready(loss)

    ref = _reference(pred_boxes, gt_boxes, gt_mask, gt_classes,
                     class_logits, classification_lambda)

    assert loss.shape == (N, A)
    assert bool(jnp.isfinite(loss).all())
    assert bool(jnp.allclose(loss, ref, atol=1e-4, rtol=1e-4))

    print("KERNEL_OK")
</pallas_src>

<mosaic_0001>
module attributes {stable_mosaic.version = 11 : i64} {
  func.func @_classification_loss_kernel(%arg0: i32, %arg1: memref<2x8x4xf32, #tpu.memory_space<vmem>>, %arg2: memref<2x4x4xf32, #tpu.memory_space<vmem>>, %arg3: memref<2x1x4xi32, #tpu.memory_space<vmem>>, %arg4: memref<2x1x1xf32, #tpu.memory_space<vmem>>, %arg5: memref<2x8x16xf32, #tpu.memory_space<vmem>>, %arg6: memref<2x8x1xf32, #tpu.memory_space<vmem>>) attributes {dimension_semantics = [#tpu.dimension_semantics<parallel>], iteration_bounds = array<i64: 1>, scalar_prefetch = 0 : i64, scratch_operands = 0 : i64, tpu.core_type = #tpu.core_type<tc>, window_params = [{transform_indices = @transform_0, window_bounds = array<i64: 2, 8, 4>}, {transform_indices = @transform_1, window_bounds = array<i64: 2, 4, 4>}, {transform_indices = @transform_2, window_bounds = array<i64: 2, 1, 4>}, {transform_indices = @transform_3, window_bounds = array<i64: 2, 1, 1>}, {transform_indices = @transform_4, window_bounds = array<i64: 2, 8, 16>}, {transform_indices = @transform_5, window_bounds = array<i64: 2, 8, 1>}]} {
    %c0 = arith.constant 0 : index
    %c0_0 = arith.constant 0 : index
    %c0_1 = arith.constant 0 : index
    %0 = vector.load %arg1[%c0, %c0_0, %c0_1] : memref<2x8x4xf32, #tpu.memory_space<vmem>>, vector<2x8x4xf32>
    %c0_2 = arith.constant 0 : index
    %c0_3 = arith.constant 0 : index
    %c0_4 = arith.constant 0 : index
    %1 = vector.load %arg2[%c0_2, %c0_3, %c0_4] : memref<2x4x4xf32, #tpu.memory_space<vmem>>, vector<2x4x4xf32>
    %c0_5 = arith.constant 0 : index
    %c0_6 = arith.constant 0 : index
    %c0_7 = arith.constant 0 : index
    %2 = vector.load %arg3[%c0_5, %c0_6, %c0_7] : memref<2x1x4xi32, #tpu.memory_space<vmem>>, vector<2x1x4xi32>
    %c0_8 = arith.constant 0 : index
    %c0_9 = arith.constant 0 : index
    %c0_10 = arith.constant 0 : index
    %3 = vector.load %arg5[%c0_8, %c0_9, %c0_10] : memref<2x8x16xf32, #tpu.memory_space<vmem>>, vector<2x8x16xf32>
    %4 = vector.extract_strided_slice %0 {offsets = [0, 0, 0], sizes = [2, 8, 1], strides = [1, 1, 1]} : vector<2x8x4xf32> to vector<2x8x1xf32>
    %5 = vector.extract_strided_slice %1 {offsets = [0, 0, 0], sizes = [2, 1, 4], strides = [1, 1, 1]} : vector<2x4x4xf32> to vector<2x1x4xf32>
    %6 = vector.broadcast %4 : vector<2x8x1xf32> to vector<2x8x4xf32>
    %7 = vector.broadcast %5 : vector<2x1x4xf32> to vector<2x8x4xf32>
    %8 = arith.subf %6, %7 : vector<2x8x4xf32>
    %9 = math.absf %8 : vector<2x8x4xf32>
    %10 = vector.extract_strided_slice %0 {offsets = [0, 0, 1], sizes = [2, 8, 1], strides = [1, 1, 1]} : vector<2x8x4xf32> to vector<2x8x1xf32>
    %11 = vector.extract_strided_slice %1 {offsets = [0, 1, 0], sizes = [2, 1, 4], strides = [1, 1, 1]} : vector<2x4x4xf32> to vector<2x1x4xf32>
    %12 = vector.broadcast %10 : vector<2x8x1xf32> to vector<2x8x4xf32>
    %13 = vector.broadcast %11 : vector<2x1x4xf32> to vector<2x8x4xf32>
    %14 = arith.subf %12, %13 : vector<2x8x4xf32>
    %15 = math.absf %14 : vector<2x8x4xf32>
    %16 = arith.addf %9, %15 : vector<2x8x4xf32>
    %17 = vector.extract_strided_slice %0 {offsets = [0, 0, 2], sizes = [2, 8, 1], strides = [1, 1, 1]} : vector<2x8x4xf32> to vector<2x8x1xf32>
    %18 = vector.extract_strided_slice %1 {offsets = [0, 2, 0], sizes = [2, 1, 4], strides = [1, 1, 1]} : vector<2x4x4xf32> to vector<2x1x4xf32>
    %19 = vector.broadcast %17 : vector<2x8x1xf32> to vector<2x8x4xf32>
    %20 = vector.broadcast %18 : vector<2x1x4xf32> to vector<2x8x4xf32>
    %21 = arith.subf %19, %20 : vector<2x8x4xf32>
    %22 = math.absf %21 : vector<2x8x4xf32>
    %23 = arith.addf %16, %22 : vector<2x8x4xf32>
    %24 = vector.extract_strided_slice %0 {offsets = [0, 0, 3], sizes = [2, 8, 1], strides = [1, 1, 1]} : vector<2x8x4xf32> to vector<2x8x1xf32>
    %25 = vector.extract_strided_slice %1 {offsets = [0, 3, 0], sizes = [2, 1, 4], strides = [1, 1, 1]} : vector<2x4x4xf32> to vector<2x1x4xf32>
    %26 = vector.broadcast %24 : vector<2x8x1xf32> to vector<2x8x4xf32>
    %27 = vector.broadcast %25 : vector<2x1x4xf32> to vector<2x8x4xf32>
    %28 = arith.subf %26, %27 : vector<2x8x4xf32>
    %29 = math.absf %28 : vector<2x8x4xf32>
    %30 = arith.addf %23, %29 : vector<2x8x4xf32>
    %31 = tpu.iota {dimensions = array<i32: 2>} : vector<1x1x4xi32>
    %cst = arith.constant dense<0x7F800000> : vector<2x8xf32>
    %32 = vector.multi_reduction <minimumf>, %30, %cst [2] : vector<2x8x4xf32> to vector<2x8xf32>
    %33 = vector.shape_cast %32 : vector<2x8xf32> to vector<2x8x1xf32>
    %34 = vector.broadcast %33 : vector<2x8x1xf32> to vector<2x8x4xf32>
    %35 = arith.cmpf oeq, %30, %34 : vector<2x8x4xf32>
    %c4_i32 = arith.constant 4 : i32
    %36 = vector.shape_cast %31 : vector<1x1x4xi32> to vector<1x1x4xi32>
    %37 = vector.broadcast %36 : vector<1x1x4xi32> to vector<2x8x4xi32>
    %38 = vector.broadcast %c4_i32 : i32 to vector<2x8x4xi32>
    %39 = arith.select %35, %37, %38 : vector<2x8x4xi1>, vector<2x8x4xi32>
    %cst_11 = arith.constant dense<2147483647> : vector<2x8xi32>
    %40 = vector.multi_reduction <minsi>, %39, %cst_11 [2] : vector<2x8x4xi32> to vector<2x8xi32>
    %41 = vector.shape_cast %40 : vector<2x8xi32> to vector<2x8x1xi32>
    %42 = vector.broadcast %31 : vector<1x1x4xi32> to vector<2x8x4xi32>
    %43 = vector.broadcast %41 : vector<2x8x1xi32> to vector<2x8x4xi32>
    %44 = arith.cmpi eq, %42, %43 : vector<2x8x4xi32>
    %c0_i32 = arith.constant 0 : i32
    %45 = vector.shape_cast %2 : vector<2x1x4xi32> to vector<2x1x4xi32>
    %46 = vector.broadcast %45 : vector<2x1x4xi32> to vector<2x8x4xi32>
    %47 = vector.broadcast %c0_i32 : i32 to vector<2x8x4xi32>
    %48 = arith.select %44, %46, %47 : vector<2x8x4xi1>, vector<2x8x4xi32>
    %cst_12 = arith.constant dense<0> : vector<2x8xi32>
    %49 = vector.multi_reduction <add>, %48, %cst_12 [2] : vector<2x8x4xi32> to vector<2x8xi32>
    %50 = vector.shape_cast %49 : vector<2x8xi32> to vector<2x8x1xi32>
    %cst_13 = arith.constant dense<0xFF800000> : vector<2x8xf32>
    %51 = vector.multi_reduction <maximumf>, %3, %cst_13 [2] : vector<2x8x16xf32> to vector<2x8xf32>
    %52 = vector.shape_cast %51 : vector<2x8xf32> to vector<2x8x1xf32>
    %53 = vector.broadcast %52 : vector<2x8x1xf32> to vector<2x8x16xf32>
    %54 = arith.subf %3, %53 : vector<2x8x16xf32>
    %55 = math.exp %54 : vector<2x8x16xf32>
    %cst_14 = arith.constant dense<0.000000e+00> : vector<2x8xf32>
    %56 = vector.multi_reduction <add>, %55, %cst_14 [2] : vector<2x8x16xf32> to vector<2x8xf32>
    %57 = vector.shape_cast %56 : vector<2x8xf32> to vector<2x8x1xf32>
    %58 = math.log %57 : vector<2x8x1xf32>
    %59 = arith.addf %52, %58 : vector<2x8x1xf32>
    %60 = tpu.iota {dimensions = array<i32: 2>} : vector<1x1x16xi32>
    %61 = vector.broadcast %60 : vector<1x1x16xi32> to vector<2x8x16xi32>
    %62 = vector.broadcast %50 : vector<2x8x1xi32> to vector<2x8x16xi32>
    %63 = arith.cmpi eq, %61, %62 : vector<2x8x16xi32>
    %cst_15 = arith.constant 0.000000e+00 : f32
    %64 = vector.broadcast %cst_15 : f32 to vector<2x8x16xf32>
    %65 = arith.select %63, %3, %64 : vector<2x8x16xi1>, vector<2x8x16xf32>
    %cst_16 = arith.constant dense<0.000000e+00> : vector<2x8xf32>
    %66 = vector.multi_reduction <add>, %65, %cst_16 [2] : vector<2x8x16xf32> to vector<2x8xf32>
    %67 = vector.shape_cast %66 : vector<2x8xf32> to vector<2x8x1xf32>
    %68 = arith.subf %59, %67 : vector<2x8x1xf32>
    %cst_17 = arith.constant 2.000000e+00 : f32
    %69 = vector.broadcast %cst_17 : f32 to vector<2x8x1xf32>
    %70 = arith.mulf %68, %69 : vector<2x8x1xf32>
    %c0_18 = arith.constant 0 : index
    %c0_19 = arith.constant 0 : index
    %c0_20 = arith.constant 0 : index
    %71 = vector.load %arg4[%c0_18, %c0_19, %c0_20] : memref<2x1x1xf32, #tpu.memory_space<vmem>>, vector<2x1x1xf32>
    %72 = vector.broadcast %71 : vector<2x1x1xf32> to vector<2x8x1xf32>
    %73 = arith.mulf %70, %72 : vector<2x8x1xf32>
    %c0_21 = arith.constant 0 : index
    %c0_22 = arith.constant 0 : index
    %c0_23 = arith.constant 0 : index
    %74 = vector.load %arg6[%c0_21, %c0_22, %c0_23] : memref<2x8x1xf32, #tpu.memory_space<vmem>>, vector<2x8x1xf32>
    tpu.vector_store %arg6[%c0_21, %c0_22, %c0_23], %73 {strides = array<i32>} : memref<2x8x1xf32, #tpu.memory_space<vmem>>, vector<2x8x1xf32>,
    return
  }
  func.func @transform_0(%arg0: i32) -> (i32, i32, i32) {
    %c0_i32 = arith.constant 0 : i32
    %c0_i32_0 = arith.constant 0 : i32
    %c0_i32_1 = arith.constant 0 : i32
    return %arg0, %c0_i32, %c0_i32_0 : i32, i32, i32
  }
  func.func @transform_1(%arg0: i32) -> (i32, i32, i32) {
    %c0_i32 = arith.constant 0 : i32
    %c0_i32_0 = arith.constant 0 : i32
    %c0_i32_1 = arith.constant 0 : i32
    return %arg0, %c0_i32, %c0_i32_0 : i32, i32, i32
  }
  func.func @transform_2(%arg0: i32) -> (i32, i32, i32) {
    %c0_i32 = arith.constant 0 : i32
    %c0_i32_0 = arith.constant 0 : i32
    %c0_i32_1 = arith.constant 0 : i32
    return %arg0, %c0_i32, %c0_i32_0 : i32, i32, i32
  }
  func.func @transform_3(%arg0: i32) -> (i32, i32, i32) {
    %c0_i32 = arith.constant 0 : i32
    %c0_i32_0 = arith.constant 0 : i32
    %c0_i32_1 = arith.constant 0 : i32
    return %arg0, %c0_i32, %c0_i32_0 : i32, i32, i32
  }
  func.func @transform_4(%arg0: i32) -> (i32, i32, i32) {
    %c0_i32 = arith.constant 0 : i32
    %c0_i32_0 = arith.constant 0 : i32
    %c0_i32_1 = arith.constant 0 : i32
    return %arg0, %c0_i32, %c0_i32_0 : i32, i32, i32
  }
  func.func @transform_5(%arg0: i32) -> (i32, i32, i32) {
    %c0_i32 = arith.constant 0 : i32
    %c0_i32_0 = arith.constant 0 : i32
    %c0_i32_1 = arith.constant 0 : i32
    return %arg0, %c0_i32, %c0_i32_0 : i32, i32, i32
  }
}

</mosaic_0001>

<llo_original>
// kernel: tpu_custom_call.1
$region0: #{tpu_custom_call.1}
  #allocation0 [shape = 'u32[]', space=smem, size = 0x4, offset = 0x4, fixed_abs, tag = 'smem constant byte address 0x4 - core index']
  #allocation1 [shape = 'u32[144,128]{1,0:T(1,128)}', space=vmem, size = 0x12000, scoped, tag = 'internal scratch']
  %s0 = inlined_call_operand.vmem [shape: f32[2,8,4], index: 0, kind: input, shape index: {}]
  %s1 = inlined_call_operand.vmem [shape: f32[2,4,4], index: 1, kind: input, shape index: {}]
  %s2 = inlined_call_operand.vmem [shape: s32[2,1,4], index: 2, kind: input, shape index: {}]
  %s3 = inlined_call_operand.vmem [shape: f32[2,1,1], index: 3, kind: input, shape index: {}]
  %s4 = inlined_call_operand.vmem [shape: f32[2,8,16], index: 4, kind: input, shape index: {}]
  %s5 = inlined_call_operand.vmem [shape: f32[2,8,1], index: 5, kind: output, shape index: {}]
  %s6 = sld [smem:[#allocation0]]
  $region30: #{tpu_custom_call.1} parent=0
    _
  %s8 = ssub.s32 1, %s6
  %s9 = scalar_select 0, %s8, %s6
  // Predicated region
  $region2: #{tpu_custom_call.1} parent=0 // pred_check
    _
  $region3: #{tpu_custom_call.1} parent=0 // pred_check_branch
    %11 = sbr.rel (0) target = $region5
  $region4: #{tpu_custom_call.1} parent=0 // pred_region
    _
  $region5: #{tpu_custom_call.1} parent=0 // pred_fallthru
    _
  // Predicated region
  $region6: #{tpu_custom_call.1} parent=0 // pred_check
    _
  $region7: #{tpu_custom_call.1} parent=0 // pred_check_branch
    %13 = sbr.rel (0) target = $region9
  $region8: #{tpu_custom_call.1} parent=0 // pred_region
    _
  $region9: #{tpu_custom_call.1} parent=0 // pred_fallthru
    _
  // Predicated region
  $region10: #{tpu_custom_call.1} parent=0 // pred_check
    _
  $region11: #{tpu_custom_call.1} parent=0 // pred_check_branch
    %15 = sbr.rel (0) target = $region13
  $region12: #{tpu_custom_call.1} parent=0 // pred_region
    _
  $region13: #{tpu_custom_call.1} parent=0 // pred_fallthru
    _
  // Predicated region
  $region14: #{tpu_custom_call.1} parent=0 // pred_check
    _
  $region15: #{tpu_custom_call.1} parent=0 // pred_check_branch
    %17 = sbr.rel (0) target = $region17
  $region16: #{tpu_custom_call.1} parent=0 // pred_region
    _
  $region17: #{tpu_custom_call.1} parent=0 // pred_fallthru
    _
  // Predicated region
  $region18: #{tpu_custom_call.1} parent=0 // pred_check
    _
  $region19: #{tpu_custom_call.1} parent=0 // pred_check_branch
    %19 = sbr.rel (0) target = $region21
  $region20: #{tpu_custom_call.1} parent=0 // pred_region
    _
  $region21: #{tpu_custom_call.1} parent=0 // pred_fallthru
    _
  %v20 = vld [vmem:[%s0] sm:$0xff]
  %v21 = vld [vmem:[%s0 + $0x8] sm:$0xff]
  %v22 = vld [vmem:[%s1] sm:$0xf]
  %v23 = vld [vmem:[%s1 + $0x4] sm:$0xf]
  %v24 = vld [vmem:[%s2] sm:$0x1]
  %v25 = vld [vmem:[%s2 + $0x1] sm:$0x1]
  %v26 = vld [vmem:[%s4] sm:$0xff]
  %v27 = vld [vmem:[%s4 + $0x8] sm:$0xff]
  %29 = vset.pattern.permute.xlu0 0
  %30 = vperm.xlu0 %29, %v20
  %v31 = vpop.permute.xlu0 %30
  %34 = vset.pattern.permute.xlu0 0
  %35 = vperm.xlu0 %34, %v21
  %v36 = vpop.permute.xlu0 %35
  %v38 = vlaneseq
  %v39 = vshrl.u32 %v38, 7
  %v40 = vsub.s32 0, %v39
  %v41 = vrot.slane %v22, %v40
  %v42 = vlaneseq
  %v43 = vshrl.u32 %v42, 7
  %v44 = vsub.s32 0, %v43
  %v45 = vrot.slane %v23, %v44
  %v46 = vsub.f32 %v31, %v41
  %v47 = vsub.f32 %v36, %v45
  %v48 = vand.u32 2147483647, %v46
  %v49 = vand.u32 2147483647, %v47
  %50 = vset.pattern.permute.xlu0 1
  %51 = vperm.xlu0 %50, %v20
  %v52 = vpop.permute.xlu0 %51
  %54 = vset.pattern.permute.xlu0 1
  %55 = vperm.xlu0 %54, %v21
  %v56 = vpop.permute.xlu0 %55
  %v58 = vlaneseq
  %v59 = vshrl.u32 %v58, 7
  %v60 = vsub.s32 1, %v59
  %v61 = vrot.slane %v22, %v60
  %v62 = vlaneseq
  %v63 = vshrl.u32 %v62, 7
  %v64 = vsub.s32 1, %v63
  %v65 = vrot.slane %v23, %v64
  %v66 = vsub.f32 %v52, %v61
  %v67 = vsub.f32 %v56, %v65
  %v68 = vand.u32 2147483647, %v66
  %v69 = vand.u32 2147483647, %v67
  %v70 = vadd.f32 %v48, %v68
  %v71 = vadd.f32 %v49, %v69
  %72 = vset.pattern.permute.xlu0 2
  %73 = vperm.xlu0 %72, %v20
  %v74 = vpop.permute.xlu0 %73
  %76 = vset.pattern.permute.xlu0 2
  %77 = vperm.xlu0 %76, %v21
  %v78 = vpop.permute.xlu0 %77
  %v80 = vlaneseq
  %v81 = vshrl.u32 %v80, 7
  %v82 = vsub.s32 2, %v81
  %v83 = vrot.slane %v22, %v82
  %v84 = vlaneseq
  %v85 = vshrl.u32 %v84, 7
  %v86 = vsub.s32 2, %v85
  %v87 = vrot.slane %v23, %v86
  %v88 = vsub.f32 %v74, %v83
  %v89 = vsub.f32 %v78, %v87
  %v90 = vand.u32 2147483647, %v88
  %v91 = vand.u32 2147483647, %v89
  %v92 = vadd.f32 %v70, %v90
  %v93 = vadd.f32 %v71, %v91
  %94 = vset.pattern.permute.xlu0 3
  %95 = vperm.xlu0 %94, %v20
  %v96 = vpop.permute.xlu0 %95
  %98 = vset.pattern.permute.xlu0 3
  %99 = vperm.xlu0 %98, %v21
  %v100 = vpop.permute.xlu0 %99
  %v102 = vlaneseq
  %v103 = vshrl.u32 %v102, 7
  %v104 = vsub.s32 3, %v103
  %v105 = vrot.slane %v22, %v104
  %v106 = vlaneseq
  %v107 = vshrl.u32 %v106, 7
  %v108 = vsub.s32 3, %v107
  %v109 = vrot.slane %v23, %v108
  %v110 = vsub.f32 %v96, %v105
  %v111 = vsub.f32 %v100, %v109
  %v112 = vand.u32 2147483647, %v110
  %v113 = vand.u32 2147483647, %v111
  %v114 = vadd.f32 %v92, %v112
  %v115 = vadd.f32 %v93, %v113
  %v116 = vlaneseq
  %v117 = vand.u32 %v116, 127
  %vm118 = vcmask 31744
  %v119 = vsel %vm118, %v114, inf
  %120 = vmin.xlane.f32.xlu0 %v119
  %v121 = vpop.xlane.xlu0 %120
  %v122 = vsel %vm118, %v115, inf
  %123 = vmin.xlane.f32.xlu0 %v122
  %v124 = vpop.xlane.xlu0 %123
  %vm125 = vcmp.eq.f32.partialorder %v114, %v121
  %vm126 = vcmp.eq.f32.partialorder %v115, %v124
  %v127 = vsel %vm125, %v117, 4
  %v128 = vsel %vm126, %v117, 4
  %v129 = vsel %vm118, %v127, 2147483647
  %v130 = vand.u32 %v129, 65535
  %v131 = vshra.s32 %v129, 16
  %v132 = vcvt.s32.f32 %v130
  %v133 = vcvt.s32.f32 %v131
  %134 = vmin.xlane.f32.xlu0 %v133
  %v135 = vpop.xlane.xlu0 %134
  %vm136 = vcmp.eq.f32.partialorder %v133, %v135
  %v137 = vsel %vm136, %v132, inf
  %138 = vmin.xlane.f32.xlu0 %v137
  %v139 = vpop.xlane.xlu0 %138
  %v140 = vcvt.f32.s32 %v139
  %v141 = vcvt.f32.s32 %v135
  %v142 = vshll.u32 %v141, 16
  %v143 = vadd.s32 %v142, %v140
  %v144 = vsel %vm118, %v128, 2147483647
  %v145 = vand.u32 %v144, 65535
  %v146 = vshra.s32 %v144, 16
  %v147 = vcvt.s32.f32 %v145
  %v148 = vcvt.s32.f32 %v146
  %149 = vmin.xlane.f32.xlu0 %v148
  %v150 = vpop.xlane.xlu0 %149
  %vm151 = vcmp.eq.f32.partialorder %v148, %v150
  %v152 = vsel %vm151, %v147, inf
  %153 = vmin.xlane.f32.xlu0 %v152
  %v154 = vpop.xlane.xlu0 %153
  %v155 = vcvt.f32.s32 %v154
  %v156 = vcvt.f32.s32 %v150
  %v157 = vshll.u32 %v156, 16
  %v158 = vadd.s32 %v157, %v155
  %vm159 = vcmp.eq.s32.totalorder %v117, %v143
  %vm160 = vcmp.eq.s32.totalorder %v117, %v158
  %v161 = vlaneseq
  %v162 = vshrl.u32 %v161, 7
  %v163 = vsub.s32 0, %v162
  %v164 = vrot.slane %v24, %v163
  %v165 = vlaneseq
  %v166 = vshrl.u32 %v165, 7
  %v167 = vsub.s32 0, %v166
  %v168 = vrot.slane %v25, %v167
  %v169 = vsel %vm159, %v164, 0
  %v170 = vsel %vm160, %v168, 0
  %v171 = vsel %vm118, %v169, 0
  %v172 = vand.u32 %v171, 65535
  %v173 = vshrl.u32 %v171, 16
  %v174 = vcvt.s32.f32 %v172
  %v175 = vcvt.s32.f32 %v173
  %176 = vadd.xlane.f32.xlu0 %v174
  %v177 = vpop.xlane.xlu0 %176
  %178 = vadd.xlane.f32.xlu0 %v175
  %v179 = vpop.xlane.xlu0 %178
  %v180 = vcvt.f32.s32 %v177
  %v181 = vcvt.f32.s32 %v179
  %v182 = vshll.u32 %v181, 16
  %v183 = vadd.s32 %v182, %v180
  %v184 = vsel %vm118, %v170, 0
  %v185 = vand.u32 %v184, 65535
  %v186 = vshrl.u32 %v184, 16
  %v187 = vcvt.s32.f32 %v185
  %v188 = vcvt.s32.f32 %v186
  %189 = vadd.xlane.f32.xlu0 %v187
  %v190 = vpop.xlane.xlu0 %189
  %191 = vadd.xlane.f32.xlu0 %v188
  %v192 = vpop.xlane.xlu0 %191
  %v193 = vcvt.f32.s32 %v190
  %v194 = vcvt.f32.s32 %v192
  %v195 = vshll.u32 %v194, 16
  %v196 = vadd.s32 %v195, %v193
  %vm197 = vcmask 130048
  %v198 = vsel %vm197, %v26, -inf
  %199 = vmax.xlane.f32.xlu0 %v198
  %v200 = vpop.xlane.xlu0 %199
  %v201 = vsel %vm197, %v27, -inf
  %202 = vmax.xlane.f32.xlu0 %v201
  %v203 = vpop.xlane.xlu0 %202
  %v204 = vsub.f32 %v26, %v200
  %v205 = vsub.f32 %v27, %v203
  %v206 = vmul.f32 %v204, 1.442695
  %v207 = vpow.pop %v206
  %v208 = vmul.f32 %v205, 1.442695
  %v209 = vpow.pop %v208
  %v210 = vsel %vm197, %v207, 0.0
  %211 = vadd.xlane.f32.xlu0 %v210
  %v212 = vpop.xlane.xlu0 %211
  %v213 = vsel %vm197, %v209, 0.0
  %214 = vadd.xlane.f32.xlu0 %v213
  %v215 = vpop.xlane.xlu0 %214
  %v216 = vlog2.pop %v212
  %v217 = vmul.f32 %v216, 0.6931472
  %v218 = vlog2.pop %v215
  %v219 = vmul.f32 %v218, 0.6931472
  %v220 = vadd.f32 %v200, %v217
  %v221 = vadd.f32 %v203, %v219
  %vm222 = vcmp.eq.s32.totalorder %v117, %v183
  %vm223 = vcmp.eq.s32.totalorder %v117, %v196
  %v224 = vsel %vm222, %v26, 0.0
  %v225 = vsel %vm223, %v27, 0.0
  %v226 = vsel %vm197, %v224, 0.0
  %227 = vadd.xlane.f32.xlu0 %v226
  %v228 = vpop.xlane.xlu0 %227
  %v229 = vsel %vm197, %v225, 0.0
  %230 = vadd.xlane.f32.xlu0 %v229
  %v231 = vpop.xlane.xlu0 %230
  %v232 = vsub.f32 %v220, %v228
  %v233 = vsub.f32 %v221, %v231
  %v234 = vmul.f32 %v232, 2.0
  %v235 = vmul.f32 %v233, 2.0
  %v236 = vld [vmem:[%s3] sm:$0x1]
  %v237 = vld [vmem:[%s3 + $0x1] sm:$0x1]
  %v240 = vlaneseq
  %v241 = vshrl.u32 %v240, 7
  %v242 = vsub.s32 0, %v241
  %v243 = vrot.slane %v236, %v242
  %v244 = vlaneseq
  %v245 = vshrl.u32 %v244, 7
  %v246 = vsub.s32 0, %v245
  %v247 = vrot.slane %v237, %v246
  %v250 = vmul.f32 %v234, %v243
  %v251 = vmul.f32 %v235, %v247
  %vm252 = vcmask 7168
  %253 = vst.msk [vmem:[%s5] sm:$0xff] %vm252, %v250
  %254 = vst.msk [vmem:[%s5 + $0x8] sm:$0xff] %vm252, %v251
  // Predicated region
  $region22: #{tpu_custom_call.1} parent=0 // pred_check
    _
  $region23: #{tpu_custom_call.1} parent=0 // pred_check_branch
    %256 = sbr.rel (0) target = $region25
  $region24: #{tpu_custom_call.1} parent=0 // pred_region
    _
  $region25: #{tpu_custom_call.1} parent=0 // pred_fallthru
    _
  // Predicated region
  $region26: #{tpu_custom_call.1} parent=0 // pred_check
    _
  $region27: #{tpu_custom_call.1} parent=0 // pred_check_branch
    %258 = sbr.rel (0) target = $region29
  $region28: #{tpu_custom_call.1} parent=0 // pred_region
    _
  $region29: #{tpu_custom_call.1} parent=0 // pred_fallthru
    _

</llo_original>
